<compile_context>
chip_gen: v5e
topology: v5e:2x2
jax: 0.10.0
libtpu: 0.0.40
codegen_flags: <defaults>
</compile_context>

<pallas_src>
import functools

import jax
import jax.numpy as jnp
from jax import lax
from jax.experimental import pallas as pl
from jax.experimental.pallas import tpu as pltpu


def _round_up(a, m):
    return ((a + m - 1) // m) * m


def _vmem_limit_bytes():
    # ~half of physical VMEM, capped at 64 MiB (v5e/v6e: 128 MiB -> 64 MiB;
    # v7x: 64 MiB -> 32 MiB).  Falls back to a safe 32 MiB.
    try:
        cap = getattr(pltpu.get_tpu_info(), "vmem_capacity_bytes", None)
        if cap:
            return int(min(cap // 2, 64 * 1024 * 1024))
    except Exception:
        pass
    return 32 * 1024 * 1024


def _two_layer_kernel(x_ref, we_ref, be_ref, wd_ref, bd_ref, out_ref, *,
                      compute_dtype):
    # x_ref:   (TB, P) f32 input tile -> cast in-kernel (free on the VPU)
    # we_ref:  (E, P)  encoder weight, PyTorch nn.Linear layout (no transpose)
    # be_ref:  (1, E)  f32 encoder bias
    # wd_ref:  (P, E)  decoder weight, PyTorch nn.Linear layout
    # bd_ref:  (1, P)  f32 decoder bias
    # out_ref: (TB, P) output tile (f32 or bf16)
    x = x_ref[...].astype(compute_dtype)

    # encoded = x @ W_enc.T : contract x's P axis with W_enc's last axis.
    encoded = lax.dot_general(
        x, we_ref[...],
        dimension_numbers=(((1,), (1,)), ((), ())),
        preferred_element_type=jnp.float32,
    ) + be_ref[...]

    # decoded = encoded @ W_dec.T : contract E axis with W_dec's last axis.
    decoded = lax.dot_general(
        encoded.astype(wd_ref.dtype), wd_ref[...],
        dimension_numbers=(((1,), (1,)), ((), ())),
        preferred_element_type=jnp.float32,
    ) + bd_ref[...]

    out_ref[...] = decoded.astype(out_ref.dtype)


def _folded_kernel(x_ref, w_ref, b_ref, out_ref, *, compute_dtype):
    # decoded = x @ (W_dec @ W_enc).T + (W_dec @ b_enc + b_dec)
    # w_ref: (P, P) folded weight (nn.Linear layout), b_ref: (1, P) f32 bias.
    x = x_ref[...].astype(compute_dtype)
    y = lax.dot_general(
        x, w_ref[...],
        dimension_numbers=(((1,), (1,)), ((), ())),
        preferred_element_type=jnp.float32,
    ) + b_ref[...]
    out_ref[...] = y.astype(out_ref.dtype)


def linear_autoencoder_forward(x, w_enc, b_enc, w_dec, b_dec, *,
                               tile_b=4096,
                               compute_dtype=jnp.bfloat16,
                               out_dtype=jnp.float32,
                               fold_weights=False):
    """Forward pass of LinearAutoEncoder.

    x:      (B, P) float32
    w_enc:  (E, P) float32  (PyTorch nn.Linear weight layout)
    b_enc:  (E,)   float32
    w_dec:  (P, E) float32
    b_dec:  (P,)   float32
    returns (B, P) out_dtype
    """
    B, P = x.shape
    E = w_enc.shape[0]
    assert w_enc.shape == (E, P)
    assert w_dec.shape == (P, E)

    out_dtype = jnp.dtype(out_dtype)
    compute_dtype = jnp.dtype(compute_dtype)

    # --- batch tile selection ------------------------------------------------
    # 16-row aligned (covers f32 and bf16 tiles), big enough to amortize the
    # ~0.35us/step overhead, but:
    #   * at least 4 grid steps so v7x's 2 TensorCores + full HBM BW are used,
    #   * double-buffered x+out working set <= ~20 MiB (fits v7x scoped VMEM).
    bytes_per_row = P * (x.dtype.itemsize + out_dtype.itemsize)
    tb_vmem = max(16, ((20 * 1024 * 1024) // (2 * bytes_per_row)) // 16 * 16)
    tb_steps = _round_up(max(pl.cdiv(B, 4), 1), 16)
    tb = max(16, min(tile_b, tb_vmem, tb_steps))

    grid = (pl.cdiv(B, tb),)   # ragged last block handled by Pallas (no pad)

    x_bytes = B * P * x.dtype.itemsize
    o_bytes = B * P * out_dtype.itemsize

    if fold_weights:
        # Compose the two Linears in f32, then cast once.  Valid because the
        # module has no nonlinearity and forward() only returns `decoded`.
        w = (w_dec.astype(jnp.float32) @ w_enc.astype(jnp.float32)).astype(compute_dtype)
        b = (w_dec.astype(jnp.float32) @ b_enc.astype(jnp.float32)
             + b_dec.astype(jnp.float32)).reshape(1, P)
        kernel = functools.partial(_folded_kernel, compute_dtype=compute_dtype)
        in_specs = [
            pl.BlockSpec((tb, P), lambda i: (i, 0)),   # x tile
            pl.BlockSpec((P, P), lambda i: (0, 0)),    # folded W (resident)
            pl.BlockSpec((1, P), lambda i: (0, 0)),    # folded bias
        ]
        args = (x, w, b)
        cost = pl.CostEstimate(
            flops=2 * B * P * P,
            transcendentals=0,
            bytes_accessed=x_bytes + o_bytes
            + P * P * compute_dtype.itemsize + P * 4,
        )
    else:
        # Weights in PyTorch layout, tiny and resident; biases stay f32.
        we = w_enc.astype(compute_dtype)
        wd = w_dec.astype(compute_dtype)
        be = b_enc.reshape(1, E).astype(jnp.float32)
        bd = b_dec.reshape(1, P).astype(jnp.float32)
        kernel = functools.partial(_two_layer_kernel, compute_dtype=compute_dtype)
        in_specs = [
            pl.BlockSpec((tb, P), lambda i: (i, 0)),   # x tile
            pl.BlockSpec((E, P), lambda i: (0, 0)),    # W_enc (whole, resident)
            pl.BlockSpec((1, E), lambda i: (0, 0)),    # b_enc
            pl.BlockSpec((P, E), lambda i: (0, 0)),    # W_dec (whole, resident)
            pl.BlockSpec((1, P), lambda i: (0, 0)),    # b_dec
        ]
        args = (x, we, be, wd, bd)
        cost = pl.CostEstimate(
            flops=4 * B * P * E,
            transcendentals=0,
            bytes_accessed=x_bytes + o_bytes
            + 2 * E * P * compute_dtype.itemsize + (E + P) * 4,
        )

    return pl.pallas_call(
        kernel,
        out_shape=jax.ShapeDtypeStruct((B, P), out_dtype),
        grid_spec=pltpu.PrefetchScalarGridSpec(
            num_scalar_prefetch=0,
            grid=grid,
            in_specs=in_specs,
            out_specs=pl.BlockSpec((tb, P), lambda i: (i, 0)),
        ),
        compiler_params=pltpu.CompilerParams(
            dimension_semantics=("parallel",),      # megacore-shardable on v7x
            vmem_limit_bytes=_vmem_limit_bytes(),   # generation-aware
        ),
        cost_estimate=cost,
    )(*args)


def _torch_linear_init(key, out_features, in_features):
    """Deterministic init matching nn.Linear's default (kaiming-uniform-ish)."""
    kw, kb = jax.random.split(key)
    bound = 1.0 / jnp.sqrt(in_features)
    w = jax.random.uniform(
        kw, (out_features, in_features), jnp.float32, -bound, bound
    )
    b = jax.random.uniform(kb, (out_features,), jnp.float32, -bound, bound)
    return w, b


if __name__ == "__main__":
    num_products = 256
    embedding_size = 32
    batch = 300          # deliberately NOT a multiple of the tile size

    key = jax.random.PRNGKey(0)
    k_x, k_enc, k_dec = jax.random.split(key, 3)

    x = jax.random.normal(k_x, (batch, num_products), jnp.float32)
    w_enc, b_enc = _torch_linear_init(k_enc, embedding_size, num_products)
    w_dec, b_dec = _torch_linear_init(k_dec, num_products, embedding_size)

    # Pure-JAX fp32 reference of the same forward semantics.
    ref = (x @ w_enc.T + b_enc) @ w_dec.T + b_dec

    # fp32 compute path: tight tolerance.
    out_f32 = jax.block_until_ready(linear_autoencoder_forward(
        x, w_enc, b_enc, w_dec, b_dec,
        compute_dtype=jnp.float32, out_dtype=jnp.float32))
    assert out_f32.shape == (batch, num_products)
    assert out_f32.dtype == jnp.float32
    assert jnp.allclose(out_f32, ref, atol=1e-4, rtol=1e-4)

    # Default fast path: bf16 compute (f32 accumulate), f32 output.
    out_bf = jax.block_until_ready(linear_autoencoder_forward(
        x, w_enc, b_enc, w_dec, b_dec))
    assert out_bf.shape == (batch, num_products)
    assert jnp.allclose(out_bf, ref, atol=3e-2, rtol=3e-2)

    # bf16 compute + bf16 output (lowest HBM traffic).
    out_bf_o = jax.block_until_ready(linear_autoencoder_forward(
        x, w_enc, b_enc, w_dec, b_dec, out_dtype=jnp.bfloat16))
    assert out_bf_o.dtype == jnp.bfloat16
    assert jnp.allclose(out_bf_o.astype(jnp.float32), ref, atol=3e-2, rtol=3e-2)

    # Folded single-matmul variant (W = W_dec @ W_enc, full K=256 MXU shape).
    out_fold = jax.block_until_ready(linear_autoencoder_forward(
        x, w_enc, b_enc, w_dec, b_dec, fold_weights=True))
    assert out_fold.shape == (batch, num_products)
    assert jnp.allclose(out_fold, ref, atol=3e-2, rtol=3e-2)

    print("KERNEL_OK")
</pallas_src>

<mosaic_0001>
module attributes {stable_mosaic.version = 11 : i64} {
  func.func @_two_layer_kernel(%arg0: i32, %arg1: memref<80x256xf32, #tpu.memory_space<vmem>>, %arg2: memref<32x256xf32, #tpu.memory_space<vmem>>, %arg3: memref<1x32xf32, #tpu.memory_space<vmem>>, %arg4: memref<256x32xf32, #tpu.memory_space<vmem>>, %arg5: memref<1x256xf32, #tpu.memory_space<vmem>>, %arg6: memref<80x256xf32, #tpu.memory_space<vmem>>) attributes {dimension_semantics = [#tpu.dimension_semantics<parallel>], iteration_bounds = array<i64: 4>, scalar_prefetch = 0 : i64, scratch_operands = 0 : i64, tpu.core_type = #tpu.core_type<tc>, window_params = [{transform_indices = @transform_0, window_bounds = array<i64: 80, 256>}, {pipeline_mode = #tpu.pipeline_mode<synchronous>, transform_indices = @transform_1, window_bounds = array<i64: 32, 256>}, {pipeline_mode = #tpu.pipeline_mode<synchronous>, transform_indices = @transform_2, window_bounds = array<i64: 1, 32>}, {pipeline_mode = #tpu.pipeline_mode<synchronous>, transform_indices = @transform_3, window_bounds = array<i64: 256, 32>}, {pipeline_mode = #tpu.pipeline_mode<synchronous>, transform_indices = @transform_4, window_bounds = array<i64: 1, 256>}, {transform_indices = @transform_5, window_bounds = array<i64: 80, 256>}]} {
    %c0 = arith.constant 0 : index
    %c0_0 = arith.constant 0 : index
    %0 = vector.load %arg1[%c0, %c0_0] : memref<80x256xf32, #tpu.memory_space<vmem>>, vector<80x256xf32>
    %c0_1 = arith.constant 0 : index
    %c0_2 = arith.constant 0 : index
    %1 = vector.load %arg2[%c0_1, %c0_2] : memref<32x256xf32, #tpu.memory_space<vmem>>, vector<32x256xf32>
    %cst = arith.constant dense<0.000000e+00> : vector<80x32xf32>
    %2 = tpu.matmul %0, %1, %cst {dimension_numbers = #tpu.dot_dimension_numbers<[1], [1], [0], [0], [0, 0, 1, 0], [], []>} : vector<80x256xf32>, vector<32x256xf32>, vector<80x32xf32> -> vector<80x32xf32>
    %c0_3 = arith.constant 0 : index
    %c0_4 = arith.constant 0 : index
    %3 = vector.load %arg3[%c0_3, %c0_4] : memref<1x32xf32, #tpu.memory_space<vmem>>, vector<1x32xf32>
    %4 = vector.broadcast %3 : vector<1x32xf32> to vector<80x32xf32>
    %5 = arith.addf %2, %4 : vector<80x32xf32>
    %c0_5 = arith.constant 0 : index
    %c0_6 = arith.constant 0 : index
    %6 = vector.load %arg4[%c0_5, %c0_6] : memref<256x32xf32, #tpu.memory_space<vmem>>, vector<256x32xf32>
    %cst_7 = arith.constant dense<0.000000e+00> : vector<80x256xf32>
    %7 = tpu.matmul %5, %6, %cst_7 {dimension_numbers = #tpu.dot_dimension_numbers<[1], [1], [0], [0], [0, 0, 1, 0], [], []>} : vector<80x32xf32>, vector<256x32xf32>, vector<80x256xf32> -> vector<80x256xf32>
    %c0_8 = arith.constant 0 : index
    %c0_9 = arith.constant 0 : index
    %8 = vector.load %arg5[%c0_8, %c0_9] : memref<1x256xf32, #tpu.memory_space<vmem>>, vector<1x256xf32>
    %9 = vector.broadcast %8 : vector<1x256xf32> to vector<80x256xf32>
    %10 = arith.addf %7, %9 : vector<80x256xf32>
    %c0_10 = arith.constant 0 : index
    %c0_11 = arith.constant 0 : index
    %11 = vector.load %arg6[%c0_10, %c0_11] : memref<80x256xf32, #tpu.memory_space<vmem>>, vector<80x256xf32>
    tpu.vector_store %arg6[%c0_10, %c0_11], %10 {strides = array<i32>} : memref<80x256xf32, #tpu.memory_space<vmem>>, vector<80x256xf32>,
    return
  }
  func.func @transform_0(%arg0: i32) -> (i32, i32) {
    %c0_i32 = arith.constant 0 : i32
    %c0_i32_0 = arith.constant 0 : i32
    return %arg0, %c0_i32 : i32, i32
  }
  func.func @transform_1(%arg0: i32) -> (i32, i32) {
    %c0_i32 = arith.constant 0 : i32
    %c0_i32_0 = arith.constant 0 : i32
    %c0_i32_1 = arith.constant 0 : i32
    return %c0_i32, %c0_i32_0 : i32, i32
  }
  func.func @transform_2(%arg0: i32) -> (i32, i32) {
    %c0_i32 = arith.constant 0 : i32
    %c0_i32_0 = arith.constant 0 : i32
    %c0_i32_1 = arith.constant 0 : i32
    return %c0_i32, %c0_i32_0 : i32, i32
  }
  func.func @transform_3(%arg0: i32) -> (i32, i32) {
    %c0_i32 = arith.constant 0 : i32
    %c0_i32_0 = arith.constant 0 : i32
    %c0_i32_1 = arith.constant 0 : i32
    return %c0_i32, %c0_i32_0 : i32, i32
  }
  func.func @transform_4(%arg0: i32) -> (i32, i32) {
    %c0_i32 = arith.constant 0 : i32
    %c0_i32_0 = arith.constant 0 : i32
    %c0_i32_1 = arith.constant 0 : i32
    return %c0_i32, %c0_i32_0 : i32, i32
  }
  func.func @transform_5(%arg0: i32) -> (i32, i32) {
    %c0_i32 = arith.constant 0 : i32
    %c0_i32_0 = arith.constant 0 : i32
    return %arg0, %c0_i32 : i32, i32
  }
}

</mosaic_0001>

<llo_original>
// kernel: tpu_custom_call.1
$region0: #{tpu_custom_call.1}
  #allocation0 [shape = 'u32[]', space=smem, size = 0x4, offset = 0x4, fixed_abs, tag = 'smem constant byte address 0x4 - core index']
  #allocation1 [shape = 'u32[72,128]{1,0:T(1,128)}', space=vmem, size = 0x9000, scoped, tag = 'internal scratch']
  %s0 = inlined_call_operand.hbm [shape: f32[300,256], index: 0, kind: input, shape index: {}]
  %s1 = inlined_call_operand.vmem [shape: f32[32,256], index: 1, kind: input, shape index: {}]
  %s2 = inlined_call_operand.vmem [shape: f32[1,32], index: 2, kind: input, shape index: {}]
  %s3 = inlined_call_operand.vmem [shape: f32[256,32], index: 3, kind: input, shape index: {}]
  %s4 = inlined_call_operand.vmem [shape: f32[1,256], index: 4, kind: input, shape index: {}]
  %s5 = inlined_call_operand.hbm [shape: f32[300,256], index: 5, kind: output, shape index: {}]
  %s6 = sld [smem:[#allocation0]]
  $region57: #{tpu_custom_call.1} parent=0
    _
  %s8 = ssub.s32 1, %s6
  %s9 = scalar_select 0, %s8, %s6
  $region1: #{tpu_custom_call.1} parent=0
    #allocation2 [shape = 'u8[163840]{0}', space=vmem, size = 0x28000, scoped, tag = 'input window, operand 0']
    #allocation3 [shape = 's32[2]{0}', space=sflag, size = 0x8, scoped, tag = 'scoped memory for tpu_custom_call.1']
    #allocation4 [shape = 's32[2]{0}', space=sflag, size = 0x8, scoped, tag = 'scoped memory for tpu_custom_call.1']
    #allocation5 [shape = 'u8[163840]{0}', space=vmem, size = 0x28000, scoped, tag = 'output window, operand 0']
    %10 = vsyncpa [#allocation3], 0
    %s11 = scalar_lea.sflag [#allocation3], 1
    %12 = vsyncpa %s11, 0
    %13 = vsyncpa [#allocation4], 0
    %s14 = scalar_lea.sflag [#allocation4], 1
    %15 = vsyncpa %s14, 0
    loop: start=0, step=1, limit=6
    $region2: #{tpu_custom_call.1} parent=1 // loop_pre_header
      _
    $region3: #{tpu_custom_call.1} parent=1 // loop_header
      %s17 = sphi 0, %s21
      %p18 = scmp.ge.s32.totalorder %s17, 6
      %s27 = sphi 0, %s29
      %s30 = sphi 0, %s27
      %s31 = sphi 0, %s30
      %s47 = sphi 0, %s31
      %s51 = sphi 0, %s51
      %s53 = sphi 0, %s51
      %s54 = sphi 0, %s53
      %s68 = sphi 0, %s54
      %s72 = sphi 0, %s72
      %s74 = sphi 0, %s72
      %s75 = sphi 0, %s74
      %s89 = sphi 0, %s75
      %s93 = sphi 0, %s93
      %s95 = sphi 0, %s93
      %s96 = sphi 0, %s95
      %s110 = sphi 0, %s96
      %s114 = sphi 0, %s114
      %s116 = sphi 0, %s114
      %s117 = sphi 0, %s116
      %s131 = sphi 0, %s117
      %s137 = sphi 0, %s139
      %s140 = sphi 0, %s137
      %s141 = sphi 0, %s140
      %s157 = sphi 0, %s141
    $region4: #{tpu_custom_call.1} parent=1 // loop_header_branch
      %20 = sbr.rel (%p18) target = $region8
    $region5: #{tpu_custom_call.1} parent=1 // loop_body
      %s22 = ssub.s32 %s17, 1
      %s23 = ssub.s32 %s17, 2
      %s24 = sadd.s32 %s17, 1
      %s25 = ssub.s32 %s17, %s24
      %p26 = scmp.eq.s32.totalorder %s25, 0
      %s28 = sadd.s32 %s27, 1
      %s29 = scalar_select %p26, %s27, %s28
      %p32 = pneg %p26
      %p33 = scmp.eq.s32.totalorder %s17, 3
      %p34 = por %p32, %p33
      %p35 = scmp.ne.s32.totalorder %s27, %s30
      %p36 = scmp.eq.s32.totalorder %s17, 0
      %p37 = por %p35, %p36
      %p38 = scmp.ne.s32.totalorder %s27, %s30
      %p39 = scmp.eq.s32.totalorder %s22, 3
      %p40 = por %p38, %p39
      %p41 = scmp.ne.s32.totalorder %s30, %s31
      %p42 = scmp.eq.s32.totalorder %s22, 0
      %p43 = por %p41, %p42
      %p44 = scmp.ne.s32.totalorder %s30, %s31
      %p45 = scmp.eq.s32.totalorder %s23, 3
      %p46 = por %p44, %p45
      %p48 = scmp.ne.s32.totalorder %s31, %s47
      %p49 = scmp.eq.s32.totalorder %s23, 0
      %p50 = por %p48, %p49
      %s52 = sadd.s32 %s51, 1
      %p55 = scmp.eq.s32.totalorder %s17, 3
      %p56 = scmp.ne.s32.totalorder %s51, %s53
      %p57 = scmp.eq.s32.totalorder %s17, 0
      %p58 = por %p56, %p57
      %p59 = scmp.ne.s32.totalorder %s51, %s53
      %p60 = scmp.eq.s32.totalorder %s22, 3
      %p61 = por %p59, %p60
      %p62 = scmp.ne.s32.totalorder %s53, %s54
      %p63 = scmp.eq.s32.totalorder %s22, 0
      %p64 = por %p62, %p63
      %p65 = scmp.ne.s32.totalorder %s53, %s54
      %p66 = scmp.eq.s32.totalorder %s23, 3
      %p67 = por %p65, %p66
      %p69 = scmp.ne.s32.totalorder %s54, %s68
      %p70 = scmp.eq.s32.totalorder %s23, 0
      %p71 = por %p69, %p70
      %s73 = sadd.s32 %s72, 1
      %p76 = scmp.eq.s32.totalorder %s17, 3
      %p77 = scmp.ne.s32.totalorder %s72, %s74
      %p78 = scmp.eq.s32.totalorder %s17, 0
      %p79 = por %p77, %p78
      %p80 = scmp.ne.s32.totalorder %s72, %s74
      %p81 = scmp.eq.s32.totalorder %s22, 3
      %p82 = por %p80, %p81
      %p83 = scmp.ne.s32.totalorder %s74, %s75
      %p84 = scmp.eq.s32.totalorder %s22, 0
      %p85 = por %p83, %p84
      %p86 = scmp.ne.s32.totalorder %s74, %s75
      %p87 = scmp.eq.s32.totalorder %s23, 3
      %p88 = por %p86, %p87
      %p90 = scmp.ne.s32.totalorder %s75, %s89
      %p91 = scmp.eq.s32.totalorder %s23, 0
      %p92 = por %p90, %p91
      %s94 = sadd.s32 %s93, 1
      %p97 = scmp.eq.s32.totalorder %s17, 3
      %p98 = scmp.ne.s32.totalorder %s93, %s95
      %p99 = scmp.eq.s32.totalorder %s17, 0
      %p100 = por %p98, %p99
      %p101 = scmp.ne.s32.totalorder %s93, %s95
      %p102 = scmp.eq.s32.totalorder %s22, 3
      %p103 = por %p101, %p102
      %p104 = scmp.ne.s32.totalorder %s95, %s96
      %p105 = scmp.eq.s32.totalorder %s22, 0
      %p106 = por %p104, %p105
      %p107 = scmp.ne.s32.totalorder %s95, %s96
      %p108 = scmp.eq.s32.totalorder %s23, 3
      %p109 = por %p107, %p108
      %p111 = scmp.ne.s32.totalorder %s96, %s110
      %p112 = scmp.eq.s32.totalorder %s23, 0
      %p113 = por %p111, %p112
      %s115 = sadd.s32 %s114, 1
      %p118 = scmp.eq.s32.totalorder %s17, 3
      %p119 = scmp.ne.s32.totalorder %s114, %s116
      %p120 = scmp.eq.s32.totalorder %s17, 0
      %p121 = por %p119, %p120
      %p122 = scmp.ne.s32.totalorder %s114, %s116
      %p123 = scmp.eq.s32.totalorder %s22, 3
      %p124 = por %p122, %p123
      %p125 = scmp.ne.s32.totalorder %s116, %s117
      %p126 = scmp.eq.s32.totalorder %s22, 0
      %p127 = por %p125, %p126
      %p128 = scmp.ne.s32.totalorder %s116, %s117
      %p129 = scmp.eq.s32.totalorder %s23, 3
      %p130 = por %p128, %p129
      %p132 = scmp.ne.s32.totalorder %s117, %s131
      %p133 = scmp.eq.s32.totalorder %s23, 0
      %p134 = por %p132, %p133
      %s135 = ssub.s32 %s17, %s24
      %p136 = scmp.eq.s32.totalorder %s135, 0
      %s138 = sadd.s32 %s137, 1
      %s139 = scalar_select %p136, %s137, %s138
      %p142 = pneg %p136
      %p143 = scmp.eq.s32.totalorder %s17, 3
      %p144 = por %p142, %p143
      %p145 = scmp.ne.s32.totalorder %s137, %s140
      %p146 = scmp.eq.s32.totalorder %s17, 0
      %p147 = por %p145, %p146
      %p148 = scmp.ne.s32.totalorder %s137, %s140
      %p149 = scmp.eq.s32.totalorder %s22, 3
      %p150 = por %p148, %p149
      %p151 = scmp.ne.s32.totalorder %s140, %s141
      %p152 = scmp.eq.s32.totalorder %s22, 0
      %p153 = por %p151, %p152
      %p154 = scmp.ne.s32.totalorder %s140, %s141
      %p155 = scmp.eq.s32.totalorder %s23, 3
      %p156 = por %p154, %p155
      %p158 = scmp.ne.s32.totalorder %s141, %s157
      %p159 = scmp.eq.s32.totalorder %s23, 0
      %p160 = por %p158, %p159
      %p161 = scmp.le.s32.totalorder 1, %s17
      %p162 = scmp.lt.s32.totalorder %s17, 5
      %p163 = pnand %p161, %p162
      %p164 = pneg %p163
      // Predicated region
      $region9: #{tpu_custom_call.1} parent=5 // pred_check
        _
      $region10: #{tpu_custom_call.1} parent=5 // pred_check_branch
        %166 = sbr.rel (%p163) target = $region12
      $region11: #{tpu_custom_call.1} parent=5 // pred_region
        %s167 = ssub.s32 %s17, 1
        // Predicated region
        $region13: #{tpu_custom_call.1} parent=11 // pred_check
          %p168 = pneg %p64
        $region14: #{tpu_custom_call.1} parent=11 // pred_check_branch
          %170 = sbr.rel (%p168) target = $region16
        $region15: #{tpu_custom_call.1} parent=11 // pred_region
          _
        $region16: #{tpu_custom_call.1} parent=11 // pred_fallthru
          _
        // Predicated region
        $region17: #{tpu_custom_call.1} parent=11 // pred_check
          %p171 = pneg %p85
        $region18: #{tpu_custom_call.1} parent=11 // pred_check_branch
          %173 = sbr.rel (%p171) target = $region20
        $region19: #{tpu_custom_call.1} parent=11 // pred_region
          _
        $region20: #{tpu_custom_call.1} parent=11 // pred_fallthru
          _
        // Predicated region
        $region21: #{tpu_custom_call.1} parent=11 // pred_check
          %p174 = pneg %p106
        $region22: #{tpu_custom_call.1} parent=11 // pred_check_branch
          %176 = sbr.rel (%p174) target = $region24
        $region23: #{tpu_custom_call.1} parent=11 // pred_region
          _
        $region24: #{tpu_custom_call.1} parent=11 // pred_fallthru
          _
        // Predicated region
        $region25: #{tpu_custom_call.1} parent=11 // pred_check
          %p177 = pneg %p127
        $region26: #{tpu_custom_call.1} parent=11 // pred_check_branch
          %179 = sbr.rel (%p177) target = $region28
        $region27: #{tpu_custom_call.1} parent=11 // pred_region
          _
        $region28: #{tpu_custom_call.1} parent=11 // pred_fallthru
          _
      $region12: #{tpu_custom_call.1} parent=5 // pred_fallthru
        _
      %p180 = scmp.lt.s32.totalorder %s17, 4
      // Predicated region
      $region29: #{tpu_custom_call.1} parent=5 // pred_check
        %p181 = pneg %p180
      $region30: #{tpu_custom_call.1} parent=5 // pred_check_branch
        %183 = sbr.rel (%p181) target = $region32
      $region31: #{tpu_custom_call.1} parent=5 // pred_region
        // Predicated region
        $region33: #{tpu_custom_call.1} parent=31 // pred_check
          %p184 = pneg %p37
        $region34: #{tpu_custom_call.1} parent=31 // pred_check_branch
          %186 = sbr.rel (%p184) target = $region36
        $region35: #{tpu_custom_call.1} parent=31 // pred_region
          %s187 = sand.u32 %s27, 1
          %s188 = scalar_lea.sflag [#allocation3], %s187
          %s189 = sand.u32 %s27, 1
          %s190 = smul.addr %s189, 160
          %s191 = scalar_lea.vmem [#allocation2], %s190
          %s192 = smul.u32 10, %s17
          %s193 = ssub.s32 38, %s192
          %p194 = scmp.lt.s32.totalorder %s193, 10
          %s195 = scalar_select %p194, %s193, 10
          %s196 = smul.u32 8, %s195
          %s197 = smul.u32 %s196, 2
          %s198 = ssub.s32 160, %s197
          %s199 = sshll.u32 %s198, 4
          %200 = vsyncadd %s188, %s199
          %p201 = scmp.ne.s32.totalorder 0, %s197
          %s202 = smul.addr %s192, 2
          %s203 = smul.addr %s202, 8
          %s204 = scalar_lea.hbm %s0, %s203
          %s205 = smul.u32 16, %s195
          %s206 = sshll.u32 %s204, 4
          %s207 = int_to_ptr.hbm [resolvable:$true] %s206
          %s208 = sshll.u32 %s191, 4
          %s209 = int_to_ptr.vmem [resolvable:$true] %s208
          %s210 = sshll.u32 %s205, 4
          %214 = dma.hbm_to_vmem [thread:$0]  (%p201), %s207, %s210, %s209, %s188, 256, 256, 16
        $region36: #{tpu_custom_call.1} parent=31 // pred_fallthru
          _
      $region32: #{tpu_custom_call.1} parent=5 // pred_fallthru
        _
      %p215 = scmp.le.s32.totalorder 1, %s17
      %p216 = scmp.lt.s32.totalorder %s17, 5
      %p217 = pnand %p215, %p216
      %p218 = pneg %p217
      // Predicated region
      $region37: #{tpu_custom_call.1} parent=5 // pred_check
        _
      $region38: #{tpu_custom_call.1} parent=5 // pred_check_branch
        %220 = sbr.rel (%p217) target = $region40
      $region39: #{tpu_custom_call.1} parent=5 // pred_region
        %s221 = ssub.s32 %s17, 1
        %s222 = sand.u32 %s30, 1
        %s223 = scalar_lea.sflag [#allocation3], %s222
        %s224 = sand.u32 %s30, 1
        %s225 = smul.addr %s224, 160
        %s226 = scalar_lea.vmem [#allocation2], %s225
        // Predicated region
        $region41: #{tpu_custom_call.1} parent=39 // pred_check
          %p227 = pneg %p43
        $region42: #{tpu_custom_call.1} parent=39 // pred_check_branch
          %229 = sbr.rel (%p227) target = $region44
        $region43: #{tpu_custom_call.1} parent=39 // pred_region
          %231 = dma.done %s223, 2560
        $region44: #{tpu_custom_call.1} parent=39 // pred_fallthru
          _
        %s232 = sand.u32 %s30, 1
        %s233 = scalar_lea.sflag [#allocation3], %s232
        %s234 = sand.u32 %s30, 1
        %s235 = smul.addr %s234, 160
        %s236 = scalar_lea.vmem [#allocation2], %s235
        %p237 = pneg %p43
        %p238 = pneg %p40
        %p239 = pneg %p64
        %p240 = pneg %p61
        %p241 = pneg %p85
        %p242 = pneg %p82
        %p243 = pneg %p106
        %p244 = pneg %p103
        %p245 = pneg %p127
        %p246 = pneg %p124
        %p247 = pneg %p153
        %p248 = pneg %p150
        %s249 = sand.u32 %s140, 1
        %s250 = scalar_lea.sflag [#allocation4], %s249
        %s251 = sand.u32 %s140, 1
        %s252 = smul.addr %s251, 160
        %s253 = scalar_lea.vmem [#allocation5], %s252
        %s254 = smul.u32 10, %s22
        %s255 = ssub.s32 38, %s254
        %p256 = scmp.lt.s32.totalorder %s255, 10
        %s257 = scalar_select %p256, %s255, 10
        %s258 = smul.u32 8, %s257
        %s259 = smul.u32 %s258, 2
        %s260 = smul.u32 10, %s22
        %s261 = ssub.s32 38, %s260
        %p262 = scmp.lt.s32.totalorder %s261, 10
        %s263 = scalar_select %p262, %s261, 10
        %s264 = smul.u32 8, %s263
        %s265 = smul.u32 %s264, 2
        %v266 = vld [vmem:[%s226] sm:$0xff]
        %v267 = vld [vmem:[%s226 + $0x8] sm:$0xff]
        %v268 = vld [vmem:[%s226 + $0x10] sm:$0xff]
        %v269 = vld [vmem:[%s226 + $0x18] sm:$0xff]
        %v270 = vld [vmem:[%s226 + $0x20] sm:$0xff]
        %v271 = vld [vmem:[%s226 + $0x28] sm:$0xff]
        %v272 = vld [vmem:[%s226 + $0x30] sm:$0xff]
        %v273 = vld [vmem:[%s226 + $0x38] sm:$0xff]
        %v274 = vld [vmem:[%s226 + $0x40] sm:$0xff]
        %v275 = vld [vmem:[%s226 + $0x48] sm:$0xff]
        %v276 = vld [vmem:[%s226 + $0x50] sm:$0xff]
        %v277 = vld [vmem:[%s226 + $0x58] sm:$0xff]
        %v278 = vld [vmem:[%s226 + $0x60] sm:$0xff]
        %v279 = vld [vmem:[%s226 + $0x68] sm:$0xff]
        %v280 = vld [vmem:[%s226 + $0x70] sm:$0xff]
        %v281 = vld [vmem:[%s226 + $0x78] sm:$0xff]
        %v282 = vld [vmem:[%s226 + $0x80] sm:$0xff]
        %v283 = vld [vmem:[%s226 + $0x88] sm:$0xff]
        %v284 = vld [vmem:[%s226 + $0x90] sm:$0xff]
        %v285 = vld [vmem:[%s226 + $0x98] sm:$0xff]
        %v286 = vld [vmem:[%s1] sm:$0xff]
        %v287 = vld [vmem:[%s1 + $0x8] sm:$0xff]
        %v288 = vld [vmem:[%s1 + $0x10] sm:$0xff]
        %v289 = vld [vmem:[%s1 + $0x18] sm:$0xff]
        %v290 = vld [vmem:[%s1 + $0x20] sm:$0xff]
        %v291 = vld [vmem:[%s1 + $0x28] sm:$0xff]
        %v292 = vld [vmem:[%s1 + $0x30] sm:$0xff]
        %v293 = vld [vmem:[%s1 + $0x38] sm:$0xff]
        %v294 = vld [vmem:[%s2] sm:$0x1]
        %v296 = vperm.slane %v294, 0
        %298 = vmatpush.xpose.msra.mxu0 0.0
        %299 = vmatpush.xpose.msra.mxu0 0.0
        %300 = vmatpush.xpose.msra.mxu0 0.0
        %301 = vmatpush.xpose.msra.mxu0 0.0
        %302 = vmatpush.xpose.msra.mxu0 0.0
        %303 = vmatpush.xpose.msra.mxu0 0.0
        %304 = vmatpush.xpose.msra.mxu0 0.0
        %305 = vmatpush.xpose.msra.mxu0 0.0
        %306 = vmatpush.xpose.msra.mxu0 0.0
        %307 = vmatpush.xpose.msra.mxu0 0.0
        %308 = vmatpush.xpose.msra.mxu0 0.0
        %309 = vmatpush.xpose.msra.mxu0 0.0
        %310 = vmatpush.xpose.msra.mxu0 %v292
        %311 = vmatpush.xpose.msra.mxu0 %v290
        %312 = vmatpush.xpose.msra.mxu0 %v288
        %313 = vmatpush.xpose.msra.mxu0 %v286
        %314 = vmatmul.f32.gmra.mxu0 %v266
        %v315 = vpop.f32.mrf.mxu0
        %v316 = vadd.f32 %v296, %v315
        %317 = vmatmul.f32.gmra.mxu0 %v268
        %v318 = vpop.f32.mrf.mxu0
        %v319 = vadd.f32 %v296, %v318
        %320 = vmatmul.f32.gmra.mxu0 %v270
        %v321 = vpop.f32.mrf.mxu0
        %v322 = vadd.f32 %v296, %v321
        %323 = vmatmul.f32.gmra.mxu0 %v272
        %v324 = vpop.f32.mrf.mxu0
        %v325 = vadd.f32 %v296, %v324
        %326 = vmatmul.f32.gmra.mxu0 %v274
        %v327 = vpop.f32.mrf.mxu0
        %v328 = vadd.f32 %v296, %v327
        %329 = vmatmul.f32.gmra.mxu0 %v276
        %v330 = vpop.f32.mrf.mxu0
        %v331 = vadd.f32 %v296, %v330
        %332 = vmatmul.f32.gmra.mxu0 %v278
        %v333 = vpop.f32.mrf.mxu0
        %v334 = vadd.f32 %v296, %v333
        %335 = vmatmul.f32.gmra.mxu0 %v280
        %v336 = vpop.f32.mrf.mxu0
        %v337 = vadd.f32 %v296, %v336
        %338 = vmatmul.f32.gmra.mxu0 %v282
        %v339 = vpop.f32.mrf.mxu0
        %v340 = vadd.f32 %v296, %v339
        %341 = vmatmul.f32.gmra.mxu0 %v284
        %v342 = vpop.f32.mrf.mxu0
        %v343 = vadd.f32 %v296, %v342
        %344 = vdwg.mxu0
        %345 = vmatpush.xpose.msra.mxu0 0.0
        %346 = vmatpush.xpose.msra.mxu0 0.0
        %347 = vmatpush.xpose.msra.mxu0 0.0
        %348 = vmatpush.xpose.msra.mxu0 0.0
        %349 = vmatpush.xpose.msra.mxu0 0.0
        %350 = vmatpush.xpose.msra.mxu0 0.0
        %351 = vmatpush.xpose.msra.mxu0 0.0
        %352 = vmatpush.xpose.msra.mxu0 0.0
        %353 = vmatpush.xpose.msra.mxu0 0.0
        %354 = vmatpush.xpose.msra.mxu0 0.0
        %355 = vmatpush.xpose.msra.mxu0 0.0
        %356 = vmatpush.xpose.msra.mxu0 0.0
        %357 = vmatpush.xpose.msra.mxu0 %v293
        %358 = vmatpush.xpose.msra.mxu0 %v291
        %359 = vmatpush.xpose.msra.mxu0 %v289
        %360 = vmatpush.xpose.msra.mxu0 %v287
        %361 = vmatmul.f32.gmra.mxu0 %v267
        %v362 = vpop.f32.mrf.mxu0
        %v363 = vadd.f32 %v316, %v362
        %364 = vmatmul.f32.gmra.mxu0 %v269
        %v365 = vpop.f32.mrf.mxu0
        %v366 = vadd.f32 %v319, %v365
        %367 = vmatmul.f32.gmra.mxu0 %v271
        %v368 = vpop.f32.mrf.mxu0
        %v369 = vadd.f32 %v322, %v368
        %370 = vmatmul.f32.gmra.mxu0 %v273
        %v371 = vpop.f32.mrf.mxu0
        %v372 = vadd.f32 %v325, %v371
        %373 = vmatmul.f32.gmra.mxu0 %v275
        %v374 = vpop.f32.mrf.mxu0
        %v375 = vadd.f32 %v328, %v374
        %376 = vmatmul.f32.gmra.mxu0 %v277
        %v377 = vpop.f32.mrf.mxu0
        %v378 = vadd.f32 %v331, %v377
        %379 = vmatmul.f32.gmra.mxu0 %v279
        %v380 = vpop.f32.mrf.mxu0
        %v381 = vadd.f32 %v334, %v380
        %382 = vmatmul.f32.gmra.mxu0 %v281
        %v383 = vpop.f32.mrf.mxu0
        %v384 = vadd.f32 %v337, %v383
        %385 = vmatmul.f32.gmra.mxu0 %v283
        %v386 = vpop.f32.mrf.mxu0
        %v387 = vadd.f32 %v340, %v386
        %388 = vmatmul.f32.gmra.mxu0 %v285
        %v389 = vpop.f32.mrf.mxu0
        %v390 = vadd.f32 %v343, %v389
        %391 = vdwg.mxu0
        %v392 = vld [vmem:[%s3] sm:$0xff]
        %v393 = vld [vmem:[%s3 + $0x8] sm:$0xff]
        %v394 = vld [vmem:[%s3 + $0x10] sm:$0xff]
        %v395 = vld [vmem:[%s3 + $0x18] sm:$0xff]
        %v396 = vld [vmem:[%s3 + $0x20] sm:$0xff]
        %v397 = vld [vmem:[%s3 + $0x28] sm:$0xff]
        %v398 = vld [vmem:[%s3 + $0x30] sm:$0xff]
        %v399 = vld [vmem:[%s3 + $0x38] sm:$0xff]
        %v400 = vld [vmem:[%s3 + $0x40] sm:$0xff]
        %v401 = vld [vmem:[%s3 + $0x48] sm:$0xff]
        %v402 = vld [vmem:[%s3 + $0x50] sm:$0xff]
        %v403 = vld [vmem:[%s3 + $0x58] sm:$0xff]
        %v404 = vld [vmem:[%s3 + $0x60] sm:$0xff]
        %v405 = vld [vmem:[%s3 + $0x68] sm:$0xff]
        %v406 = vld [vmem:[%s3 + $0x70] sm:$0xff]
        %v407 = vld [vmem:[%s3 + $0x78] sm:$0xff]
        %v408 = vld [vmem:[%s3 + $0x80] sm:$0xff]
        %v409 = vld [vmem:[%s3 + $0x88] sm:$0xff]
        %v410 = vld [vmem:[%s3 + $0x90] sm:$0xff]
        %v411 = vld [vmem:[%s3 + $0x98] sm:$0xff]
        %v412 = vld [vmem:[%s3 + $0xa0] sm:$0xff]
        %v413 = vld [vmem:[%s3 + $0xa8] sm:$0xff]
        %v414 = vld [vmem:[%s3 + $0xb0] sm:$0xff]
        %v415 = vld [vmem:[%s3 + $0xb8] sm:$0xff]
        %v416 = vld [vmem:[%s3 + $0xc0] sm:$0xff]
        %v417 = vld [vmem:[%s3 + $0xc8] sm:$0xff]
        %v418 = vld [vmem:[%s3 + $0xd0] sm:$0xff]
        %v419 = vld [vmem:[%s3 + $0xd8] sm:$0xff]
        %v420 = vld [vmem:[%s3 + $0xe0] sm:$0xff]
        %v421 = vld [vmem:[%s3 + $0xe8] sm:$0xff]
        %v422 = vld [vmem:[%s3 + $0xf0] sm:$0xff]
        %v423 = vld [vmem:[%s3 + $0xf8] sm:$0xff]
        %v424 = vld [vmem:[%s4] sm:$0x3]
        %v426 = vperm.slane %v424, 0
        %v427 = vperm.slane %v424, 1
        %vm430 = vcmask 261120
        %v432 = vsel %vm430, %v363, 0
        %v435 = vsel %vm430, %v366, 0
        %v438 = vsel %vm430, %v369, 0
        %v441 = vsel %vm430, %v372, 0
        %v444 = vsel %vm430, %v375, 0
        %v447 = vsel %vm430, %v378, 0
        %v450 = vsel %vm430, %v381, 0
        %v453 = vsel %vm430, %v384, 0
        %v456 = vsel %vm430, %v387, 0
        %v459 = vsel %vm430, %v390, 0
        %v462 = vsel %vm430, %v392, 0
        %v465 = vsel %vm430, %v393, 0
        %v468 = vsel %vm430, %v394, 0
        %v471 = vsel %vm430, %v395, 0
        %v474 = vsel %vm430, %v396, 0
        %v477 = vsel %vm430, %v397, 0
        %v480 = vsel %vm430, %v398, 0
        %v483 = vsel %vm430, %v399, 0
        %v486 = vsel %vm430, %v400, 0
        %v489 = vsel %vm430, %v401, 0
        %v492 = vsel %vm430, %v402, 0
        %v495 = vsel %vm430, %v403, 0
        %v498 = vsel %vm430, %v404, 0
        %v501 = vsel %vm430, %v405, 0
        %v504 = vsel %vm430, %v406, 0
        %v507 = vsel %vm430, %v407, 0
        %v510 = vsel %vm430, %v408, 0
        %v513 = vsel %vm430, %v409, 0
        %v516 = vsel %vm430, %v410, 0
        %v519 = vsel %vm430, %v411, 0
        %v522 = vsel %vm430, %v412, 0
        %v525 = vsel %vm430, %v413, 0
        %v528 = vsel %vm430, %v414, 0
        %v531 = vsel %vm430, %v415, 0
        %v534 = vsel %vm430, %v416, 0
        %v537 = vsel %vm430, %v417, 0
        %v540 = vsel %vm430, %v418, 0
        %v543 = vsel %vm430, %v419, 0
        %v546 = vsel %vm430, %v420, 0
        %v549 = vsel %vm430, %v421, 0
        %v552 = vsel %vm430, %v422, 0
        %v555 = vsel %vm430, %v423, 0
        %557 = vmatpush.xpose.msra.mxu0 %v507
        %558 = vmatpush.xpose.msra.mxu0 %v504
        %559 = vmatpush.xpose.msra.mxu0 %v501
        %560 = vmatpush.xpose.msra.mxu0 %v498
        %561 = vmatpush.xpose.msra.mxu0 %v495
        %562 = vmatpush.xpose.msra.mxu0 %v492
        %563 = vmatpush.xpose.msra.mxu0 %v489
        %564 = vmatpush.xpose.msra.mxu0 %v486
        %565 = vmatpush.xpose.msra.mxu0 %v483
        %566 = vmatpush.xpose.msra.mxu0 %v480
        %567 = vmatpush.xpose.msra.mxu0 %v477
        %568 = vmatpush.xpose.msra.mxu0 %v474
        %569 = vmatpush.xpose.msra.mxu0 %v471
        %570 = vmatpush.xpose.msra.mxu0 %v468
        %571 = vmatpush.xpose.msra.mxu0 %v465
        %572 = vmatpush.xpose.msra.mxu0 %v462
        %573 = vmatmul.f32.gmra.mxu0 %v432
        %v574 = vpop.f32.mrf.mxu0
        %v575 = vadd.f32 %v426, %v574
        %576 = vmatmul.f32.gmra.mxu0 %v435
        %v577 = vpop.f32.mrf.mxu0
        %v578 = vadd.f32 %v426, %v577
        %579 = vmatmul.f32.gmra.mxu0 %v438
        %v580 = vpop.f32.mrf.mxu0
        %v581 = vadd.f32 %v426, %v580
        %582 = vmatmul.f32.gmra.mxu0 %v441
        %v583 = vpop.f32.mrf.mxu0
        %v584 = vadd.f32 %v426, %v583
        %585 = vmatmul.f32.gmra.mxu0 %v444
        %v586 = vpop.f32.mrf.mxu0
        %v587 = vadd.f32 %v426, %v586
        %588 = vmatmul.f32.gmra.mxu0 %v447
        %v589 = vpop.f32.mrf.mxu0
        %v590 = vadd.f32 %v426, %v589
        %591 = vmatmul.f32.gmra.mxu0 %v450
        %v592 = vpop.f32.mrf.mxu0
        %v593 = vadd.f32 %v426, %v592
        %594 = vmatmul.f32.gmra.mxu0 %v453
        %v595 = vpop.f32.mrf.mxu0
        %v596 = vadd.f32 %v426, %v595
        %597 = vmatmul.f32.gmra.mxu0 %v456
        %v598 = vpop.f32.mrf.mxu0
        %v599 = vadd.f32 %v426, %v598
        %600 = vmatmul.f32.gmra.mxu0 %v459
        %v601 = vpop.f32.mrf.mxu0
        %v602 = vadd.f32 %v426, %v601
        %603 = vdwg.mxu0
        %604 = vmatpush.xpose.msra.mxu0 %v555
        %605 = vmatpush.xpose.msra.mxu0 %v552
        %606 = vmatpush.xpose.msra.mxu0 %v549
        %607 = vmatpush.xpose.msra.mxu0 %v546
        %608 = vmatpush.xpose.msra.mxu0 %v543
        %609 = vmatpush.xpose.msra.mxu0 %v540
        %610 = vmatpush.xpose.msra.mxu0 %v537
        %611 = vmatpush.xpose.msra.mxu0 %v534
        %612 = vmatpush.xpose.msra.mxu0 %v531
        %613 = vmatpush.xpose.msra.mxu0 %v528
        %614 = vmatpush.xpose.msra.mxu0 %v525
        %615 = vmatpush.xpose.msra.mxu0 %v522
        %616 = vmatpush.xpose.msra.mxu0 %v519
        %617 = vmatpush.xpose.msra.mxu0 %v516
        %618 = vmatpush.xpose.msra.mxu0 %v513
        %619 = vmatpush.xpose.msra.mxu0 %v510
        %620 = vmatmul.f32.gmra.mxu0 %v432
        %v621 = vpop.f32.mrf.mxu0
        %v622 = vadd.f32 %v427, %v621
        %623 = vmatmul.f32.gmra.mxu0 %v435
        %v624 = vpop.f32.mrf.mxu0
        %v625 = vadd.f32 %v427, %v624
        %626 = vmatmul.f32.gmra.mxu0 %v438
        %v627 = vpop.f32.mrf.mxu0
        %v628 = vadd.f32 %v427, %v627
        %629 = vmatmul.f32.gmra.mxu0 %v441
        %v630 = vpop.f32.mrf.mxu0
        %v631 = vadd.f32 %v427, %v630
        %632 = vmatmul.f32.gmra.mxu0 %v444
        %v633 = vpop.f32.mrf.mxu0
        %v634 = vadd.f32 %v427, %v633
        %635 = vmatmul.f32.gmra.mxu0 %v447
        %v636 = vpop.f32.mrf.mxu0
        %v637 = vadd.f32 %v427, %v636
        %638 = vmatmul.f32.gmra.mxu0 %v450
        %v639 = vpop.f32.mrf.mxu0
        %v640 = vadd.f32 %v427, %v639
        %641 = vmatmul.f32.gmra.mxu0 %v453
        %v642 = vpop.f32.mrf.mxu0
        %v643 = vadd.f32 %v427, %v642
        %644 = vmatmul.f32.gmra.mxu0 %v456
        %v645 = vpop.f32.mrf.mxu0
        %v646 = vadd.f32 %v427, %v645
        %647 = vmatmul.f32.gmra.mxu0 %v459
        %v648 = vpop.f32.mrf.mxu0
        %v649 = vadd.f32 %v427, %v648
        %650 = vdwg.mxu0
        %651 = vst [vmem:[%s253] sm:$0xff] %v575
        %652 = vst [vmem:[%s253 + $0x8] sm:$0xff] %v622
        %653 = vst [vmem:[%s253 + $0x10] sm:$0xff] %v578
        %654 = vst [vmem:[%s253 + $0x18] sm:$0xff] %v625
        %655 = vst [vmem:[%s253 + $0x20] sm:$0xff] %v581
        %656 = vst [vmem:[%s253 + $0x28] sm:$0xff] %v628
        %657 = vst [vmem:[%s253 + $0x30] sm:$0xff] %v584
        %658 = vst [vmem:[%s253 + $0x38] sm:$0xff] %v631
        %659 = vst [vmem:[%s253 + $0x40] sm:$0xff] %v587
        %660 = vst [vmem:[%s253 + $0x48] sm:$0xff] %v634
        %661 = vst [vmem:[%s253 + $0x50] sm:$0xff] %v590
        %662 = vst [vmem:[%s253 + $0x58] sm:$0xff] %v637
        %663 = vst [vmem:[%s253 + $0x60] sm:$0xff] %v593
        %664 = vst [vmem:[%s253 + $0x68] sm:$0xff] %v640
        %665 = vst [vmem:[%s253 + $0x70] sm:$0xff] %v596
        %666 = vst [vmem:[%s253 + $0x78] sm:$0xff] %v643
        %667 = vst [vmem:[%s253 + $0x80] sm:$0xff] %v599
        %668 = vst [vmem:[%s253 + $0x88] sm:$0xff] %v646
        %669 = vst [vmem:[%s253 + $0x90] sm:$0xff] %v602
        %670 = vst [vmem:[%s253 + $0x98] sm:$0xff] %v649
        %s671 = sand.u32 %s140, 1
        %s672 = scalar_lea.sflag [#allocation4], %s671
        %s673 = sand.u32 %s140, 1
        %s674 = smul.addr %s673, 160
        %s675 = scalar_lea.vmem [#allocation5], %s674
        // Predicated region
        $region45: #{tpu_custom_call.1} parent=39 // pred_check
          %p676 = pneg %p150
        $region46: #{tpu_custom_call.1} parent=39 // pred_check_branch
          %678 = sbr.rel (%p676) target = $region48
        $region47: #{tpu_custom_call.1} parent=39 // pred_region
          %s679 = smul.u32 10, %s22
          %s680 = ssub.s32 38, %s679
          %p681 = scmp.lt.s32.totalorder %s680, 10
          %s682 = scalar_select %p681, %s680, 10
          %s683 = smul.u32 8, %s682
          %s684 = smul.u32 %s683, 2
          %s685 = ssub.s32 160, %s684
          %s686 = sshll.u32 %s685, 4
          %687 = vsyncadd %s672, %s686
          %p688 = scmp.ne.s32.totalorder 0, %s684
          %s689 = smul.addr %s679, 2
          %s690 = smul.addr %s689, 8
          %s691 = scalar_lea.hbm %s5, %s690
          %s692 = smul.u32 16, %s682
          %s693 = sshll.u32 %s675, 4
          %s694 = int_to_ptr.vmem [resolvable:$true] %s693
          %s695 = sshll.u32 %s691, 4
          %s696 = int_to_ptr.hbm [resolvable:$true] %s695
          %s697 = sshll.u32 %s692, 4
          %701 = dma.vmem_to_hbm [thread:$0]  (%p688), %s694, %s697, %s696, %s672, 256, 256, 16
        $region48: #{tpu_custom_call.1} parent=39 // pred_fallthru
          _
      $region40: #{tpu_custom_call.1} parent=5 // pred_fallthru
        _
      %p702 = scmp.le.s32.totalorder 2, %s17
      // Predicated region
      $region49: #{tpu_custom_call.1} parent=5 // pred_check
        %p703 = pneg %p702
      $region50: #{tpu_custom_call.1} parent=5 // pred_check_branch
        %705 = sbr.rel (%p703) target = $region52
      $region51: #{tpu_custom_call.1} parent=5 // pred_region
        %s706 = ssub.s32 %s17, 2
        // Predicated region
        $region53: #{tpu_custom_call.1} parent=51 // pred_check
          %p707 = pneg %p156
        $region54: #{tpu_custom_call.1} parent=51 // pred_check_branch
          %709 = sbr.rel (%p707) target = $region56
        $region55: #{tpu_custom_call.1} parent=51 // pred_region
          %s710 = sand.u32 %s141, 1
          %s711 = scalar_lea.sflag [#allocation4], %s710
          %s712 = sand.u32 %s141, 1
          %s713 = smul.addr %s712, 160
          %s714 = scalar_lea.vmem [#allocation5], %s713
          %716 = dma.done %s711, 2560
        $region56: #{tpu_custom_call.1} parent=51 // pred_fallthru
          _
      $region52: #{tpu_custom_call.1} parent=5 // pred_fallthru
        _
    $region6: #{tpu_custom_call.1} parent=1 // loop_footer
      %s21 = sadd.s32 1, %s17
    $region7: #{tpu_custom_call.1} parent=1 // loop_footer_branch
      %16 = sbr.rel target = $region3
    $region8: #{tpu_custom_call.1} parent=1 // loop_exit
      _
    %717 = vsyncpa [#allocation3], 1
    %s718 = scalar_lea.sflag [#allocation3], 1
    %719 = vsyncpa %s718, 1
    %720 = vsyncpa [#allocation4], 1
    %s721 = scalar_lea.sflag [#allocation4], 1
    %722 = vsyncpa %s721, 1

</llo_original>
